<compile_context>
chip_gen: v7x
topology: tpu7x:2x2x1
jax: 0.10.0
libtpu: 0.0.40
codegen_flags: <defaults>
</compile_context>

<pallas_src>
import functools

import jax
import jax.numpy as jnp
from jax.experimental import pallas as pl
from jax.experimental.pallas import tpu as pltpu

_LANE = 128
# ~2 MiB of f32 per input block: 2 inputs x 2 pipeline buffers x 2 MiB = 8 MiB.
_BLOCK_ELEMS = 512 * 1024


def _dice_loss_kernel(x_ref, y_ref, o_ref, inter_acc, sum_acc, *,
                      smooth, total_rows, block_rows, need_row_mask):
    k = pl.program_id(1)
    nk = pl.num_programs(1)

    x = x_ref[...]
    y = y_ref[...]

    if need_row_mask:
        # Only the final row-block can be partial; zeros are neutral for all sums.
        row_ids = jax.lax.broadcasted_iota(jnp.int32, x.shape, dimension=1)
        valid = total_rows - k * block_rows
        m = row_ids < valid
        zero = jnp.array(0, x.dtype)
        x = jnp.where(m, x, zero)
        y = jnp.where(m, y, zero)

    # Fused: sum(x) + sum(y) == sum(x + y).  Reduce the lane axis first, then
    # the row axis, accumulating in f32.
    prod = (x * y).astype(jnp.float32)
    sxy = (x + y).astype(jnp.float32)
    inter = jnp.sum(jnp.sum(prod, axis=2, keepdims=True), axis=1, keepdims=True)
    ssum = jnp.sum(jnp.sum(sxy, axis=2, keepdims=True), axis=1, keepdims=True)

    @pl.when(k == 0)
    def _():
        inter_acc[...] = jnp.zeros_like(inter_acc)
        sum_acc[...] = jnp.zeros_like(sum_acc)

    inter_acc[...] += inter
    sum_acc[...] += ssum

    @pl.when(k == nk - 1)
    def _():
        dsc = (2.0 * inter_acc[...] + smooth) / (sum_acc[...] + smooth)
        o_ref[...] = (1.0 - dsc).astype(o_ref.dtype)


def dice_loss(inputs, targets, smooth: float = 1.0, reduction: str = "sum"):
    """Dice loss over a batch; inputs/targets shaped (B, C, H, W) (NCHW)."""
    assert inputs.shape == targets.shape
    b = inputs.shape[0]
    n = 1
    for d in inputs.shape[1:]:
        n *= d

    x = inputs.reshape(b, n)
    y = targets.reshape(b, n)

    if n % _LANE != 0:
        # TODO(synk): rare non-128-multiple samples take a small tail pad (an
        # XLA copy); a lane-masked 2-D path would avoid it but is unnecessary
        # for typical NCHW shapes.
        n_pad = pl.cdiv(n, _LANE) * _LANE
        x = jnp.pad(x, ((0, 0), (0, n_pad - n)))
        y = jnp.pad(y, ((0, 0), (0, n_pad - n)))
        n = n_pad

    rows = n // _LANE
    x = x.reshape(b, rows, _LANE)
    y = y.reshape(b, rows, _LANE)

    max_rows_per_block = _BLOCK_ELEMS // _LANE  # 4096 rows ~= 2 MiB f32
    if rows <= max_rows_per_block:
        # Small samples: whole sample per step, batch several samples per block.
        block_rows = rows  # equals full row extent -> no row mask needed
        samples_per_block = max(1, min(b, _BLOCK_ELEMS // (rows * _LANE)))
    else:
        # Large samples: tile the reduction (row) axis.
        block_rows = max_rows_per_block
        samples_per_block = 1

    num_b = pl.cdiv(b, samples_per_block)
    num_k = pl.cdiv(rows, block_rows)
    need_row_mask = (rows % block_rows) != 0

    kernel = functools.partial(
        _dice_loss_kernel,
        smooth=float(smooth),
        total_rows=rows,
        block_rows=block_rows,
        need_row_mask=need_row_mask,
    )

    in_block = (samples_per_block, block_rows, _LANE)
    bytes_in = x.size * x.dtype.itemsize + y.size * y.dtype.itemsize

    out = pl.pallas_call(
        kernel,
        out_shape=jax.ShapeDtypeStruct((b, 1, 1), jnp.float32),
        grid_spec=pltpu.PrefetchScalarGridSpec(
            num_scalar_prefetch=0,
            grid=(num_b, num_k),
            in_specs=[
                pl.BlockSpec(in_block, lambda bi, ki: (bi, ki, 0)),
                pl.BlockSpec(in_block, lambda bi, ki: (bi, ki, 0)),
            ],
            out_specs=pl.BlockSpec(
                (samples_per_block, 1, 1), lambda bi, ki: (bi, 0, 0)),
            scratch_shapes=[
                pltpu.VMEM((samples_per_block, 1, 1), jnp.float32),
                pltpu.VMEM((samples_per_block, 1, 1), jnp.float32),
            ],
        ),
        compiler_params=pltpu.CompilerParams(
            # batch axis parallel (v7x: 2 TCs); reduction axis last, arbitrary.
            dimension_semantics=("parallel", "arbitrary"),
        ),
        cost_estimate=pl.CostEstimate(
            flops=4 * b * n, transcendentals=0,
            bytes_accessed=bytes_in + b * 4),
    )(x, y)

    loss = jnp.sum(out.reshape(b))
    if reduction == "mean":
        # NOTE: the PyTorch reference's 'mean' branch divides by an undefined
        # name (a bug); we divide by the batch size instead.
        loss = loss / b
    return loss


def _reference_dice_loss(inputs, targets, smooth=1.0):
    b = inputs.shape[0]
    loss = jnp.float32(0.0)
    for i in range(b):
        p = inputs[i].reshape(-1).astype(jnp.float32)
        t = targets[i].reshape(-1).astype(jnp.float32)
        inter = jnp.sum(p * t)
        dsc = (2.0 * inter + smooth) / (jnp.sum(p) + jnp.sum(t) + smooth)
        loss = loss + (1.0 - dsc)
    return loss


if __name__ == "__main__":
    key = jax.random.PRNGKey(0)
    k1, k2 = jax.random.split(key)

    # NCHW: batch=2, channels=4, spatial=16x16
    inputs = jax.nn.sigmoid(jax.random.normal(k1, (2, 4, 16, 16), jnp.float32))
    targets = (jax.random.uniform(k2, (2, 4, 16, 16)) > 0.5).astype(jnp.float32)

    loss = dice_loss(inputs, targets, smooth=1.0, reduction="sum")
    loss = jax.block_until_ready(loss)

    ref = _reference_dice_loss(inputs, targets, smooth=1.0)
    assert jnp.allclose(loss, ref, rtol=1e-5, atol=1e-5), (loss, ref)

    print("KERNEL_OK")
</pallas_src>

<mosaic_0001>
module attributes {stable_mosaic.version = 11 : i64} {
  func.func @_dice_loss_kernel(%arg0: i32, %arg1: i32, %arg2: memref<2x8x128xf32, #tpu.memory_space<vmem>>, %arg3: memref<2x8x128xf32, #tpu.memory_space<vmem>>, %arg4: memref<2x1x1xf32, #tpu.memory_space<vmem>>, %arg5: memref<2x1x1xf32, #tpu.memory_space<vmem>>, %arg6: memref<2x1x1xf32, #tpu.memory_space<vmem>>) attributes {dimension_semantics = [#tpu.dimension_semantics<parallel>, #tpu.dimension_semantics<arbitrary>], iteration_bounds = array<i64: 1, 1>, scalar_prefetch = 0 : i64, scratch_operands = 2 : i64, tpu.core_type = #tpu.core_type<tc>, window_params = [{transform_indices = @transform_0, window_bounds = array<i64: 2, 8, 128>}, {transform_indices = @transform_1, window_bounds = array<i64: 2, 8, 128>}, {transform_indices = @transform_2, window_bounds = array<i64: 2, 1, 1>}]} {
    %c0 = arith.constant 0 : index
    %c0_0 = arith.constant 0 : index
    %c0_1 = arith.constant 0 : index
    %0 = vector.load %arg2[%c0, %c0_0, %c0_1] : memref<2x8x128xf32, #tpu.memory_space<vmem>>, vector<2x8x128xf32>
    %c0_2 = arith.constant 0 : index
    %c0_3 = arith.constant 0 : index
    %c0_4 = arith.constant 0 : index
    %1 = vector.load %arg3[%c0_2, %c0_3, %c0_4] : memref<2x8x128xf32, #tpu.memory_space<vmem>>, vector<2x8x128xf32>
    %2 = arith.mulf %0, %1 : vector<2x8x128xf32>
    %3 = arith.addf %0, %1 : vector<2x8x128xf32>
    %cst = arith.constant dense<0.000000e+00> : vector<2x8xf32>
    %4 = vector.multi_reduction <add>, %2, %cst [2] : vector<2x8x128xf32> to vector<2x8xf32>
    %5 = vector.shape_cast %4 : vector<2x8xf32> to vector<2x8x1xf32>
    %cst_5 = arith.constant dense<0.000000e+00> : vector<2x1xf32>
    %6 = vector.multi_reduction <add>, %5, %cst_5 [1] : vector<2x8x1xf32> to vector<2x1xf32>
    %7 = vector.shape_cast %6 : vector<2x1xf32> to vector<2x1x1xf32>
    %cst_6 = arith.constant dense<0.000000e+00> : vector<2x8xf32>
    %8 = vector.multi_reduction <add>, %3, %cst_6 [2] : vector<2x8x128xf32> to vector<2x8xf32>
    %9 = vector.shape_cast %8 : vector<2x8xf32> to vector<2x8x1xf32>
    %cst_7 = arith.constant dense<0.000000e+00> : vector<2x1xf32>
    %10 = vector.multi_reduction <add>, %9, %cst_7 [1] : vector<2x8x1xf32> to vector<2x1xf32>
    %11 = vector.shape_cast %10 : vector<2x1xf32> to vector<2x1x1xf32>
    %c0_i32 = arith.constant 0 : i32
    %12 = arith.cmpi eq, %arg1, %c0_i32 : i32
    %13 = arith.extui %12 : i1 to i32
    %c0_i32_8 = arith.constant 0 : i32
    %14 = arith.cmpi ne, %13, %c0_i32_8 : i32
    scf.if %14 {
      %cst_23 = arith.constant 0.000000e+00 : f32
      %24 = vector.broadcast %cst_23 : f32 to vector<2x1x1xf32>
      %c0_24 = arith.constant 0 : index
      %c0_25 = arith.constant 0 : index
      %c0_26 = arith.constant 0 : index
      %25 = vector.load %arg5[%c0_24, %c0_25, %c0_26] : memref<2x1x1xf32, #tpu.memory_space<vmem>>, vector<2x1x1xf32>
      tpu.vector_store %arg5[%c0_24, %c0_25, %c0_26], %24 {strides = array<i32>} : memref<2x1x1xf32, #tpu.memory_space<vmem>>, vector<2x1x1xf32>,
      %cst_27 = arith.constant 0.000000e+00 : f32
      %26 = vector.broadcast %cst_27 : f32 to vector<2x1x1xf32>
      %c0_28 = arith.constant 0 : index
      %c0_29 = arith.constant 0 : index
      %c0_30 = arith.constant 0 : index
      %27 = vector.load %arg6[%c0_28, %c0_29, %c0_30] : memref<2x1x1xf32, #tpu.memory_space<vmem>>, vector<2x1x1xf32>
      tpu.vector_store %arg6[%c0_28, %c0_29, %c0_30], %26 {strides = array<i32>} : memref<2x1x1xf32, #tpu.memory_space<vmem>>, vector<2x1x1xf32>,
    } else {
    }
    %c0_9 = arith.constant 0 : index
    %c0_10 = arith.constant 0 : index
    %c0_11 = arith.constant 0 : index
    %15 = vector.load %arg5[%c0_9, %c0_10, %c0_11] : memref<2x1x1xf32, #tpu.memory_space<vmem>>, vector<2x1x1xf32>
    %16 = arith.addf %15, %7 : vector<2x1x1xf32>
    %c0_12 = arith.constant 0 : index
    %c0_13 = arith.constant 0 : index
    %c0_14 = arith.constant 0 : index
    %17 = vector.load %arg5[%c0_12, %c0_13, %c0_14] : memref<2x1x1xf32, #tpu.memory_space<vmem>>, vector<2x1x1xf32>
    tpu.vector_store %arg5[%c0_12, %c0_13, %c0_14], %16 {strides = array<i32>} : memref<2x1x1xf32, #tpu.memory_space<vmem>>, vector<2x1x1xf32>,
    %c0_15 = arith.constant 0 : index
    %c0_16 = arith.constant 0 : index
    %c0_17 = arith.constant 0 : index
    %18 = vector.load %arg6[%c0_15, %c0_16, %c0_17] : memref<2x1x1xf32, #tpu.memory_space<vmem>>, vector<2x1x1xf32>
    %19 = arith.addf %18, %11 : vector<2x1x1xf32>
    %c0_18 = arith.constant 0 : index
    %c0_19 = arith.constant 0 : index
    %c0_20 = arith.constant 0 : index
    %20 = vector.load %arg6[%c0_18, %c0_19, %c0_20] : memref<2x1x1xf32, #tpu.memory_space<vmem>>, vector<2x1x1xf32>
    tpu.vector_store %arg6[%c0_18, %c0_19, %c0_20], %19 {strides = array<i32>} : memref<2x1x1xf32, #tpu.memory_space<vmem>>, vector<2x1x1xf32>,
    %c0_i32_21 = arith.constant 0 : i32
    %21 = arith.cmpi eq, %arg1, %c0_i32_21 : i32
    %22 = arith.extui %21 : i1 to i32
    %c0_i32_22 = arith.constant 0 : i32
    %23 = arith.cmpi ne, %22, %c0_i32_22 : i32
    scf.if %23 {
      %c0_23 = arith.constant 0 : index
      %c0_24 = arith.constant 0 : index
      %c0_25 = arith.constant 0 : index
      %24 = vector.load %arg5[%c0_23, %c0_24, %c0_25] : memref<2x1x1xf32, #tpu.memory_space<vmem>>, vector<2x1x1xf32>
      %cst_26 = arith.constant 2.000000e+00 : f32
      %25 = vector.broadcast %cst_26 : f32 to vector<2x1x1xf32>
      %26 = arith.mulf %25, %24 : vector<2x1x1xf32>
      %cst_27 = arith.constant 1.000000e+00 : f32
      %27 = vector.broadcast %cst_27 : f32 to vector<2x1x1xf32>
      %28 = arith.addf %26, %27 : vector<2x1x1xf32>
      %c0_28 = arith.constant 0 : index
      %c0_29 = arith.constant 0 : index
      %c0_30 = arith.constant 0 : index
      %29 = vector.load %arg6[%c0_28, %c0_29, %c0_30] : memref<2x1x1xf32, #tpu.memory_space<vmem>>, vector<2x1x1xf32>
      %cst_31 = arith.constant 1.000000e+00 : f32
      %30 = vector.broadcast %cst_31 : f32 to vector<2x1x1xf32>
      %31 = arith.addf %29, %30 : vector<2x1x1xf32>
      %32 = arith.divf %28, %31 : vector<2x1x1xf32>
      %cst_32 = arith.constant 1.000000e+00 : f32
      %33 = vector.broadcast %cst_32 : f32 to vector<2x1x1xf32>
      %34 = arith.subf %33, %32 : vector<2x1x1xf32>
      %c0_33 = arith.constant 0 : index
      %c0_34 = arith.constant 0 : index
      %c0_35 = arith.constant 0 : index
      %35 = vector.load %arg4[%c0_33, %c0_34, %c0_35] : memref<2x1x1xf32, #tpu.memory_space<vmem>>, vector<2x1x1xf32>
      tpu.vector_store %arg4[%c0_33, %c0_34, %c0_35], %34 {strides = array<i32>} : memref<2x1x1xf32, #tpu.memory_space<vmem>>, vector<2x1x1xf32>,
    } else {
    }
    return
  }
  func.func @transform_0(%arg0: i32, %arg1: i32) -> (i32, i32, i32) {
    %c0_i32 = arith.constant 0 : i32
    %c0_i32_0 = arith.constant 0 : i32
    return %arg0, %arg1, %c0_i32 : i32, i32, i32
  }
  func.func @transform_1(%arg0: i32, %arg1: i32) -> (i32, i32, i32) {
    %c0_i32 = arith.constant 0 : i32
    %c0_i32_0 = arith.constant 0 : i32
    return %arg0, %arg1, %c0_i32 : i32, i32, i32
  }
  func.func @transform_2(%arg0: i32, %arg1: i32) -> (i32, i32, i32) {
    %c0_i32 = arith.constant 0 : i32
    %c0_i32_0 = arith.constant 0 : i32
    %c0_i32_1 = arith.constant 0 : i32
    return %arg0, %c0_i32, %c0_i32_0 : i32, i32, i32
  }
}

</mosaic_0001>

<llo_original>
// kernel: tpu_custom_call.1
$region0: #{tpu_custom_call.1}
  #allocation0 [shape = 'u32[]', space=smem, size = 0x4, offset = 0x4, fixed_abs, tag = 'smem constant byte address 0x4 - core index']
  #allocation1 [shape = 'u32[144,128]{1,0:T(1,128)}', space=vmem, size = 0x12000, scoped, tag = 'internal scratch']
  #allocation2 [shape = 'f32[2,1,1]{2,1,0:T(1,128)}', space=vmem, size = 0x400, scoped, tag = 'scratch operand']
  #allocation3 [shape = 'f32[2,1,1]{2,1,0:T(1,128)}', space=vmem, size = 0x400, scoped, tag = 'scratch operand']
  %s0 = inlined_call_operand.hbm [shape: f32[2,8,128], index: 0, kind: input, shape index: {}]
  %s1 = inlined_call_operand.hbm [shape: f32[2,8,128], index: 1, kind: input, shape index: {}]
  %s2 = inlined_call_operand.vmem [shape: f32[2,1,1], index: 2, kind: output, shape index: {}]
  %s3 = sld [smem:[#allocation0]]
  $region34: #{tpu_custom_call.1} parent=0
    _
  %s5 = ssub.s32 1, %s3
  %s6 = scalar_select 0, %s5, %s3
  $region1: #{tpu_custom_call.1} parent=0
    #allocation4 [shape = 'u8[8192]{0}', space=vmem, size = 0x2000, scoped, tag = 'input window, operand 0, single buffered']
    #allocation5 [shape = 's32[1]{0}', space=sflag, size = 0x4, scoped, tag = 'scoped memory for tpu_custom_call.1']
    #allocation6 [shape = 'u8[8192]{0}', space=vmem, size = 0x2000, scoped, tag = 'input window, operand 1, single buffered']
    #allocation7 [shape = 's32[1]{0}', space=sflag, size = 0x4, scoped, tag = 'scoped memory for tpu_custom_call.1']
    %7 = vsyncpa [#allocation5], 0
    %8 = vsyncpa [#allocation7], 0
    // Predicated region
    $region2: #{tpu_custom_call.1} parent=1 // pred_check
      _
    $region3: #{tpu_custom_call.1} parent=1 // pred_check_branch
      %10 = sbr.rel (0) target = $region5
    $region4: #{tpu_custom_call.1} parent=1 // pred_region
      %s12 = ssub.s32 256, 256
      %13 = vsyncadd [#allocation5], %s12
      %s14 = sshll.u32 [#allocation4], 4
      %s15 = int_to_ptr.vmem [resolvable:$true] %s14
      %20 = dma.hbm_to_vmem [thread:$0]  %s0, 256, %s15, [#allocation5], 128, 128, 8
    $region5: #{tpu_custom_call.1} parent=1 // pred_fallthru
      _
    // Predicated region
    $region6: #{tpu_custom_call.1} parent=1 // pred_check
      _
    $region7: #{tpu_custom_call.1} parent=1 // pred_check_branch
      %22 = sbr.rel (0) target = $region9
    $region8: #{tpu_custom_call.1} parent=1 // pred_region
      %s24 = ssub.s32 256, 256
      %25 = vsyncadd [#allocation7], %s24
      %s26 = sshll.u32 [#allocation6], 4
      %s27 = int_to_ptr.vmem [resolvable:$true] %s26
      %32 = dma.hbm_to_vmem [thread:$0]  %s1, 256, %s27, [#allocation7], 128, 128, 8
    $region9: #{tpu_custom_call.1} parent=1 // pred_fallthru
      _
    // Predicated region
    $region10: #{tpu_custom_call.1} parent=1 // pred_check
      _
    $region11: #{tpu_custom_call.1} parent=1 // pred_check_branch
      %34 = sbr.rel (0) target = $region13
    $region12: #{tpu_custom_call.1} parent=1 // pred_region
      %35 = dma.done [#allocation5], 256
    $region13: #{tpu_custom_call.1} parent=1 // pred_fallthru
      _
    // Predicated region
    $region14: #{tpu_custom_call.1} parent=1 // pred_check
      _
    $region15: #{tpu_custom_call.1} parent=1 // pred_check_branch
      %37 = sbr.rel (0) target = $region17
    $region16: #{tpu_custom_call.1} parent=1 // pred_region
      %38 = dma.done [#allocation7], 256
    $region17: #{tpu_custom_call.1} parent=1 // pred_fallthru
      _
    %v39 = vld [vmem:[#allocation4] sm:$0xff]
    %v40 = vld [vmem:[#allocation4 + $0x8] sm:$0xff]
    %v41 = vld [vmem:[#allocation6] sm:$0xff]
    %v42 = vld [vmem:[#allocation6 + $0x8] sm:$0xff]
    %v43 = vmul.f32 %v39, %v41
    %v44 = vmul.f32 %v40, %v42
    %v45 = vadd.f32 %v39, %v41
    %v46 = vadd.f32 %v40, %v42
    %47 = vadd.xlane.f32.xlu0 %v43
    %v48 = vpop.xlane.xlu0 %47
    %49 = vadd.xlane.f32.xlu0 %v44
    %v50 = vpop.xlane.xlu0 %49
    %v51 = vrot.slane %v48, 4
    %v52 = vadd.f32 %v48, %v51
    %v53 = vrot.slane %v52, 2
    %v54 = vadd.f32 %v52, %v53
    %v55 = vrot.slane %v54, 1
    %v56 = vadd.f32 %v54, %v55
    %v57 = vrot.slane %v50, 4
    %v58 = vadd.f32 %v50, %v57
    %v59 = vrot.slane %v58, 2
    %v60 = vadd.f32 %v58, %v59
    %v61 = vrot.slane %v60, 1
    %v62 = vadd.f32 %v60, %v61
    %63 = vadd.xlane.f32.xlu0 %v45
    %v64 = vpop.xlane.xlu0 %63
    %65 = vadd.xlane.f32.xlu0 %v46
    %v66 = vpop.xlane.xlu0 %65
    %v67 = vrot.slane %v64, 4
    %v68 = vadd.f32 %v64, %v67
    %v69 = vrot.slane %v68, 2
    %v70 = vadd.f32 %v68, %v69
    %v71 = vrot.slane %v70, 1
    %v72 = vadd.f32 %v70, %v71
    %v73 = vrot.slane %v66, 4
    %v74 = vadd.f32 %v66, %v73
    %v75 = vrot.slane %v74, 2
    %v76 = vadd.f32 %v74, %v75
    %v77 = vrot.slane %v76, 1
    %v78 = vadd.f32 %v76, %v77
    %p79 = scmp.eq.s32.totalorder 0, 0
    // Predicated region
    $region18: #{tpu_custom_call.1} parent=1 // pred_check
      %p80 = pneg %p79
    $region19: #{tpu_custom_call.1} parent=1 // pred_check_branch
      %82 = sbr.rel (%p80) target = $region21
    $region20: #{tpu_custom_call.1} parent=1 // pred_region
      %vm83 = vcmask 0
      %84 = vst.msk [vmem:[#allocation2] sm:$0x1] %vm83, 0.0
      %85 = vst.msk [vmem:[#allocation2 + $0x1] sm:$0x1] %vm83, 0.0
      %86 = vst.msk [vmem:[#allocation3] sm:$0x1] %vm83, 0.0
      %87 = vst.msk [vmem:[#allocation3 + $0x1] sm:$0x1] %vm83, 0.0
    $region21: #{tpu_custom_call.1} parent=1 // pred_fallthru
      _
    %v88 = vld [vmem:[#allocation2] sm:$0x1]
    %v89 = vld [vmem:[#allocation2 + $0x1] sm:$0x1]
    %v90 = vadd.f32 %v88, %v56
    %v91 = vadd.f32 %v89, %v62
    %vm92 = vcmask 0
    %93 = vst.msk [vmem:[#allocation2] sm:$0x1] %vm92, %v90
    %94 = vst.msk [vmem:[#allocation2 + $0x1] sm:$0x1] %vm92, %v91
    %v95 = vld [vmem:[#allocation3] sm:$0x1]
    %v96 = vld [vmem:[#allocation3 + $0x1] sm:$0x1]
    %v97 = vadd.f32 %v95, %v72
    %v98 = vadd.f32 %v96, %v78
    %99 = vst.msk [vmem:[#allocation3] sm:$0x1] %vm92, %v97
    %100 = vst.msk [vmem:[#allocation3 + $0x1] sm:$0x1] %vm92, %v98
    // Predicated region
    $region22: #{tpu_custom_call.1} parent=1 // pred_check
      %p101 = pneg %p79
    $region23: #{tpu_custom_call.1} parent=1 // pred_check_branch
      %103 = sbr.rel (%p101) target = $region25
    $region24: #{tpu_custom_call.1} parent=1 // pred_region
      %v104 = vld [vmem:[#allocation2] sm:$0x1]
      %v105 = vld [vmem:[#allocation2 + $0x1] sm:$0x1]
      %v106 = vmul.f32 %v104, 2.0
      %v107 = vmul.f32 %v105, 2.0
      %v108 = vadd.f32 %v106, 1.0
      %v109 = vadd.f32 %v107, 1.0
      %v110 = vld [vmem:[#allocation3] sm:$0x1]
      %v111 = vld [vmem:[#allocation3 + $0x1] sm:$0x1]
      %v112 = vadd.f32 %v110, 1.0
      %v113 = vadd.f32 %v111, 1.0
      %v114 = vrcp.pop %v112
      %v115 = vmul.f32 %v108, %v114
      %v116 = vrcp.pop %v113
      %v117 = vmul.f32 %v109, %v116
      %v118 = vsub.f32 1.0, %v115
      %v119 = vsub.f32 1.0, %v117
      %120 = vst.msk [vmem:[%s2] sm:$0x1] %vm92, %v118
      %121 = vst.msk [vmem:[%s2 + $0x1] sm:$0x1] %vm92, %v119
    $region25: #{tpu_custom_call.1} parent=1 // pred_fallthru
      _
    // Predicated region
    $region26: #{tpu_custom_call.1} parent=1 // pred_check
      _
    $region27: #{tpu_custom_call.1} parent=1 // pred_check_branch
      %123 = sbr.rel (0) target = $region29
    $region28: #{tpu_custom_call.1} parent=1 // pred_region
      _
    $region29: #{tpu_custom_call.1} parent=1 // pred_fallthru
      _
    // Predicated region
    $region30: #{tpu_custom_call.1} parent=1 // pred_check
      _
    $region31: #{tpu_custom_call.1} parent=1 // pred_check_branch
      %125 = sbr.rel (0) target = $region33
    $region32: #{tpu_custom_call.1} parent=1 // pred_region
      _
    $region33: #{tpu_custom_call.1} parent=1 // pred_fallthru
      _
    %126 = vsyncpa [#allocation5], 1
    %127 = vsyncpa [#allocation7], 1

</llo_original>
